<compile_context>
chip_gen: v7x
topology: tpu7x:2x2x1
jax: 0.10.0
libtpu: 0.0.40
codegen_flags: <defaults>
</compile_context>

<pallas_src>
import functools

import jax
import jax.numpy as jnp
from jax.experimental import pallas as pl
from jax.experimental.pallas import tpu as pltpu


def _sepconv_kernel(x_ref, dw_ref, pw_ref, o_ref, *, K, dilation, H, Cin, L):
    """Fused depthwise (VPU + XLU rolls) + pointwise (MXU) separable conv.

    One grid step processes one batch element.

    x_ref  : (Hp, L)       padded input, lanes packed as (w*Cin + c), zero-padded to L
    dw_ref : (K*K, L)      depthwise weight per tap, tiled across W, zero beyond W*Cin
    pw_ref : (L, W*Cout)   block-diagonal pointwise weight (zero rows beyond W*Cin)
    o_ref  : (H, W*Cout)   output, lanes packed as (w*Cout + o)
    """
    acc = jnp.zeros((H, L), jnp.float32)
    for kh in range(K):
        # One full-lane, unmasked load per kh; kw shifts go to the XLU.
        rows = x_ref[pl.ds(kh * dilation, H), :].astype(jnp.float32)      # (H, L)
        for kw in range(K):
            off = kw * dilation * Cin
            shifted = rows if off == 0 else pltpu.roll(rows, shift=L - off, axis=1)
            w_tap = dw_ref[pl.ds(kh * K + kw, 1), :].astype(jnp.float32)  # (1, L)
            acc = acc + shifted * w_tap

    # Pointwise 1x1 conv: single MXU contraction directly on the packed layout
    # (no reshapes; block-diagonal weight performs the (w,c)->(w,o) mapping,
    # zero rows kill the padded lanes).
    o_ref[...] = jnp.dot(acc, pw_ref[...].astype(jnp.float32),
                         preferred_element_type=jnp.float32).astype(o_ref.dtype)


def separable_conv2d_same(x_nchw, dw_oihw, pw_oihw, *, stride=1, dilation=1):
    """Forward pass of SeparableConv2d_same.

    x_nchw  : (N, Cin, H, W)
    dw_oihw : (Cin, 1, K, K)     depthwise conv weight (groups = Cin)
    pw_oihw : (Cout, Cin, 1, 1)  pointwise conv weight
    """
    N, Cin, H, W = x_nchw.shape
    Cout = pw_oihw.shape[0]
    K = dw_oihw.shape[2]
    assert dw_oihw.shape == (Cin, 1, K, K)
    assert pw_oihw.shape == (Cout, Cin, 1, 1)
    # TODO(synk): stride > 1 and bias=True paths are not implemented
    # (module defaults are stride=1, bias=False).
    assert stride == 1, "only stride=1 (module default) is supported"

    # fixed_padding (matches the PyTorch helper exactly)
    eff_k = K + (K - 1) * (dilation - 1)
    pad_total = eff_k - 1
    pad_beg = pad_total // 2
    pad_end = pad_total - pad_beg
    Hp = H + pad_total
    Wp = W + pad_total

    WCin = W * Cin
    WCout = W * Cout
    # Lane-align the packed padded width to a multiple of 128: full-lane loads,
    # and the kw shifts become single-vreg lane rotations.
    L = max(128, -(-(Wp * Cin) // 128) * 128)

    # NCHW -> padded NHWC -> packed (N, Hp, Wp*Cin) -> lane-padded (N, Hp, L).
    x = jnp.transpose(x_nchw, (0, 2, 3, 1))
    x = jnp.pad(x, ((0, 0), (pad_beg, pad_end), (pad_beg, pad_end), (0, 0)))
    x = x.reshape(N, Hp, Wp * Cin)
    x = jnp.pad(x, ((0, 0), (0, 0), (0, L - Wp * Cin)))

    # Depthwise weight: (Cin,1,K,K) -> (K*K, Cin) tap-major -> tiled across W
    # -> zero-padded to L lanes.  2-D, ~2 vregs total.
    dw_taps = jnp.transpose(dw_oihw[:, 0], (1, 2, 0)).reshape(K * K, Cin)
    dwp = jnp.pad(jnp.tile(dw_taps, (1, W)), ((0, 0), (0, L - WCin)))

    # Pointwise weight as a block-diagonal matmul operand on the packed layout:
    # pwbd[w*Cin + c, w*Cout + o] = pw[o, c]; zero rows beyond W*Cin.
    pw2 = jnp.transpose(pw_oihw[:, :, 0, 0], (1, 0))             # (Cin, Cout)
    pwbd = jnp.kron(jnp.eye(W, dtype=pw2.dtype), pw2)            # (W*Cin, W*Cout)
    pwbd = jnp.pad(pwbd, ((0, L - WCin), (0, 0)))                # (L, W*Cout)

    kernel = functools.partial(_sepconv_kernel, K=K, dilation=dilation,
                               H=H, Cin=Cin, L=L)

    flops = 2 * N * H * W * Cin * (K * K + Cout)
    bytes_accessed = 4 * (x.size + dwp.size + pwbd.size + N * H * WCout)

    # Grid = (N,): one step per batch element (H fully collapsed into the block)
    # -> 2 steps total here instead of 4, and the "parallel" N axis lets v7x's
    # two TensorCores split the batch.
    # TODO(synk): for production (Xception-scale) shapes, halo-block the input
    # along H (block height Hb + (K-1)*dilation) and set vmem_limit_bytes from
    # the per-chip budget (64 MiB/TC on v7x) instead of holding the full padded
    # image per step.
    out_packed = pl.pallas_call(
        kernel,
        out_shape=jax.ShapeDtypeStruct((N, H, WCout), x_nchw.dtype),
        grid=(N,),
        in_specs=[
            pl.BlockSpec((None, Hp, L), lambda n: (n, 0, 0)),
            pl.BlockSpec((K * K, L), lambda n: (0, 0)),
            pl.BlockSpec((L, WCout), lambda n: (0, 0)),
        ],
        out_specs=pl.BlockSpec((None, H, WCout), lambda n: (n, 0, 0)),
        compiler_params=pltpu.CompilerParams(
            dimension_semantics=("parallel",)),
        cost_estimate=pl.CostEstimate(flops=flops, transcendentals=0,
                                      bytes_accessed=bytes_accessed),
    )(x, dwp, pwbd)

    out = out_packed.reshape(N, H, W, Cout)
    # NOTE: if this layer is chained, consume the packed NHWC output directly
    # and drop this transpose (it is an extra HBM round-trip kept only for the
    # PyTorch NCHW interface).
    return jnp.transpose(out, (0, 3, 1, 2))


def _reference(x_nchw, dw_oihw, pw_oihw, *, dilation):
    """Pure-JAX reference matching SeparableConv2d_same.forward."""
    K = dw_oihw.shape[2]
    eff_k = K + (K - 1) * (dilation - 1)
    pad_total = eff_k - 1
    pb, pe = pad_total // 2, pad_total - pad_total // 2
    y = jax.lax.conv_general_dilated(
        x_nchw.astype(jnp.float32), dw_oihw.astype(jnp.float32),
        window_strides=(1, 1), padding=[(pb, pe), (pb, pe)],
        rhs_dilation=(dilation, dilation),
        dimension_numbers=("NCHW", "OIHW", "NCHW"),
        feature_group_count=x_nchw.shape[1])
    z = jax.lax.conv_general_dilated(
        y, pw_oihw.astype(jnp.float32),
        window_strides=(1, 1), padding=[(0, 0), (0, 0)],
        dimension_numbers=("NCHW", "OIHW", "NCHW"))
    return z


if __name__ == "__main__":
    # SeparableConv2d_same(inplanes=4, planes=8, kernel_size=3)
    inplanes, planes, K = 4, 8, 3
    N, H, W = 2, 16, 16

    key = jax.random.PRNGKey(0)
    kx, kd, kp = jax.random.split(key, 3)

    x = jax.random.normal(kx, (N, inplanes, H, W), dtype=jnp.float32)
    dw = jax.random.normal(kd, (inplanes, 1, K, K), dtype=jnp.float32) * (1.0 / (K * K))
    pw = jax.random.normal(kp, (planes, inplanes, 1, 1), dtype=jnp.float32) * (1.0 / inplanes)

    # Check both the default (dilation=1) and a dilated (rate=2) configuration.
    for dilation in (1, 2):
        out = separable_conv2d_same(x, dw, pw, dilation=dilation)
        out = jax.block_until_ready(out)
        ref = _reference(x, dw, pw, dilation=dilation)
        assert out.shape == (N, planes, H, W)
        assert jnp.allclose(out, ref, rtol=1e-4, atol=1e-4), \
            f"mismatch vs reference (dilation={dilation})"

    print("KERNEL_OK")
</pallas_src>

<mosaic_0001>
module attributes {stable_mosaic.version = 11 : i64} {
  func.func @_sepconv_kernel(%arg0: i32, %arg1: memref<1x18x128xf32, #tpu.memory_space<vmem>>, %arg2: memref<9x128xf32, #tpu.memory_space<vmem>>, %arg3: memref<128x128xf32, #tpu.memory_space<vmem>>, %arg4: memref<1x16x128xf32, #tpu.memory_space<vmem>>) attributes {dimension_semantics = [#tpu.dimension_semantics<parallel>], iteration_bounds = array<i64: 2>, scalar_prefetch = 0 : i64, scratch_operands = 0 : i64, tpu.core_type = #tpu.core_type<tc>, window_params = [{transform_indices = @transform_0, window_bounds = array<i64: 1, 18, 128>}, {pipeline_mode = #tpu.pipeline_mode<synchronous>, transform_indices = @transform_1, window_bounds = array<i64: 9, 128>}, {pipeline_mode = #tpu.pipeline_mode<synchronous>, transform_indices = @transform_2, window_bounds = array<i64: 128, 128>}, {transform_indices = @transform_3, window_bounds = array<i64: 1, 16, 128>}]} {
    %cst = arith.constant 0.000000e+00 : f32
    %0 = vector.broadcast %cst : f32 to vector<16x128xf32>
    %c0 = arith.constant 0 : index
    %c0_0 = arith.constant 0 : index
    %c0_1 = arith.constant 0 : index
    %1 = vector.load %arg1[%c0, %c0_0, %c0_1] : memref<1x18x128xf32, #tpu.memory_space<vmem>>, vector<1x16x128xf32>
    %2 = vector.shape_cast %1 : vector<1x16x128xf32> to vector<16x128xf32>
    %c0_2 = arith.constant 0 : index
    %c0_3 = arith.constant 0 : index
    %3 = vector.load %arg2[%c0_2, %c0_3] : memref<9x128xf32, #tpu.memory_space<vmem>>, vector<1x128xf32>
    %4 = vector.broadcast %3 : vector<1x128xf32> to vector<16x128xf32>
    %5 = arith.mulf %2, %4 : vector<16x128xf32>
    %6 = arith.addf %0, %5 : vector<16x128xf32>
    %c124_i32 = arith.constant 124 : i32
    %7 = tpu.dynamic_rotate %2 by %c124_i32 dim 1 : vector<16x128xf32>, i32 -> vector<16x128xf32>
    %c1 = arith.constant 1 : index
    %c0_4 = arith.constant 0 : index
    %8 = vector.load %arg2[%c1, %c0_4] : memref<9x128xf32, #tpu.memory_space<vmem>>, vector<1x128xf32>
    %9 = vector.broadcast %8 : vector<1x128xf32> to vector<16x128xf32>
    %10 = arith.mulf %7, %9 : vector<16x128xf32>
    %11 = arith.addf %6, %10 : vector<16x128xf32>
    %c120_i32 = arith.constant 120 : i32
    %12 = tpu.dynamic_rotate %2 by %c120_i32 dim 1 : vector<16x128xf32>, i32 -> vector<16x128xf32>
    %c2 = arith.constant 2 : index
    %c0_5 = arith.constant 0 : index
    %13 = vector.load %arg2[%c2, %c0_5] : memref<9x128xf32, #tpu.memory_space<vmem>>, vector<1x128xf32>
    %14 = vector.broadcast %13 : vector<1x128xf32> to vector<16x128xf32>
    %15 = arith.mulf %12, %14 : vector<16x128xf32>
    %16 = arith.addf %11, %15 : vector<16x128xf32>
    %c0_6 = arith.constant 0 : index
    %c1_7 = arith.constant 1 : index
    %c0_8 = arith.constant 0 : index
    %17 = vector.load %arg1[%c0_6, %c1_7, %c0_8] : memref<1x18x128xf32, #tpu.memory_space<vmem>>, vector<1x16x128xf32>
    %18 = vector.shape_cast %17 : vector<1x16x128xf32> to vector<16x128xf32>
    %c3 = arith.constant 3 : index
    %c0_9 = arith.constant 0 : index
    %19 = vector.load %arg2[%c3, %c0_9] : memref<9x128xf32, #tpu.memory_space<vmem>>, vector<1x128xf32>
    %20 = vector.broadcast %19 : vector<1x128xf32> to vector<16x128xf32>
    %21 = arith.mulf %18, %20 : vector<16x128xf32>
    %22 = arith.addf %16, %21 : vector<16x128xf32>
    %c124_i32_10 = arith.constant 124 : i32
    %23 = tpu.dynamic_rotate %18 by %c124_i32_10 dim 1 : vector<16x128xf32>, i32 -> vector<16x128xf32>
    %c4 = arith.constant 4 : index
    %c0_11 = arith.constant 0 : index
    %24 = vector.load %arg2[%c4, %c0_11] : memref<9x128xf32, #tpu.memory_space<vmem>>, vector<1x128xf32>
    %25 = vector.broadcast %24 : vector<1x128xf32> to vector<16x128xf32>
    %26 = arith.mulf %23, %25 : vector<16x128xf32>
    %27 = arith.addf %22, %26 : vector<16x128xf32>
    %c120_i32_12 = arith.constant 120 : i32
    %28 = tpu.dynamic_rotate %18 by %c120_i32_12 dim 1 : vector<16x128xf32>, i32 -> vector<16x128xf32>
    %c5 = arith.constant 5 : index
    %c0_13 = arith.constant 0 : index
    %29 = vector.load %arg2[%c5, %c0_13] : memref<9x128xf32, #tpu.memory_space<vmem>>, vector<1x128xf32>
    %30 = vector.broadcast %29 : vector<1x128xf32> to vector<16x128xf32>
    %31 = arith.mulf %28, %30 : vector<16x128xf32>
    %32 = arith.addf %27, %31 : vector<16x128xf32>
    %c0_14 = arith.constant 0 : index
    %c2_15 = arith.constant 2 : index
    %c0_16 = arith.constant 0 : index
    %33 = vector.load %arg1[%c0_14, %c2_15, %c0_16] : memref<1x18x128xf32, #tpu.memory_space<vmem>>, vector<1x16x128xf32>
    %34 = vector.shape_cast %33 : vector<1x16x128xf32> to vector<16x128xf32>
    %c6 = arith.constant 6 : index
    %c0_17 = arith.constant 0 : index
    %35 = vector.load %arg2[%c6, %c0_17] : memref<9x128xf32, #tpu.memory_space<vmem>>, vector<1x128xf32>
    %36 = vector.broadcast %35 : vector<1x128xf32> to vector<16x128xf32>
    %37 = arith.mulf %34, %36 : vector<16x128xf32>
    %38 = arith.addf %32, %37 : vector<16x128xf32>
    %c124_i32_18 = arith.constant 124 : i32
    %39 = tpu.dynamic_rotate %34 by %c124_i32_18 dim 1 : vector<16x128xf32>, i32 -> vector<16x128xf32>
    %c7 = arith.constant 7 : index
    %c0_19 = arith.constant 0 : index
    %40 = vector.load %arg2[%c7, %c0_19] : memref<9x128xf32, #tpu.memory_space<vmem>>, vector<1x128xf32>
    %41 = vector.broadcast %40 : vector<1x128xf32> to vector<16x128xf32>
    %42 = arith.mulf %39, %41 : vector<16x128xf32>
    %43 = arith.addf %38, %42 : vector<16x128xf32>
    %c120_i32_20 = arith.constant 120 : i32
    %44 = tpu.dynamic_rotate %34 by %c120_i32_20 dim 1 : vector<16x128xf32>, i32 -> vector<16x128xf32>
    %c8 = arith.constant 8 : index
    %c0_21 = arith.constant 0 : index
    %45 = vector.load %arg2[%c8, %c0_21] : memref<9x128xf32, #tpu.memory_space<vmem>>, vector<1x128xf32>
    %46 = vector.broadcast %45 : vector<1x128xf32> to vector<16x128xf32>
    %47 = arith.mulf %44, %46 : vector<16x128xf32>
    %48 = arith.addf %43, %47 : vector<16x128xf32>
    %c0_22 = arith.constant 0 : index
    %c0_23 = arith.constant 0 : index
    %49 = vector.load %arg3[%c0_22, %c0_23] : memref<128x128xf32, #tpu.memory_space<vmem>>, vector<128x128xf32>
    %cst_24 = arith.constant dense<0.000000e+00> : vector<16x128xf32>
    %50 = tpu.matmul %48, %49, %cst_24 {dimension_numbers = #tpu.dot_dimension_numbers<[1], [0], [0], [1], [0, 0, 1, 1], [], []>} : vector<16x128xf32>, vector<128x128xf32>, vector<16x128xf32> -> vector<16x128xf32>
    %c0_25 = arith.constant 0 : index
    %c0_26 = arith.constant 0 : index
    %c0_27 = arith.constant 0 : index
    %51 = vector.load %arg4[%c0_25, %c0_26, %c0_27] : memref<1x16x128xf32, #tpu.memory_space<vmem>>, vector<1x16x128xf32>
    %52 = vector.shape_cast %51 : vector<1x16x128xf32> to vector<16x128xf32>
    %53 = vector.shape_cast %50 : vector<16x128xf32> to vector<1x16x128xf32>
    tpu.vector_store %arg4[%c0_25, %c0_26, %c0_27], %53 {strides = array<i32>} : memref<1x16x128xf32, #tpu.memory_space<vmem>>, vector<1x16x128xf32>,
    return
  }
  func.func @transform_0(%arg0: i32) -> (i32, i32, i32) {
    %c0_i32 = arith.constant 0 : i32
    %c0_i32_0 = arith.constant 0 : i32
    %c0_i32_1 = arith.constant 0 : i32
    return %arg0, %c0_i32, %c0_i32_0 : i32, i32, i32
  }
  func.func @transform_1(%arg0: i32) -> (i32, i32) {
    %c0_i32 = arith.constant 0 : i32
    %c0_i32_0 = arith.constant 0 : i32
    %c0_i32_1 = arith.constant 0 : i32
    return %c0_i32, %c0_i32_0 : i32, i32
  }
  func.func @transform_2(%arg0: i32) -> (i32, i32) {
    %c0_i32 = arith.constant 0 : i32
    %c0_i32_0 = arith.constant 0 : i32
    %c0_i32_1 = arith.constant 0 : i32
    return %c0_i32, %c0_i32_0 : i32, i32
  }
  func.func @transform_3(%arg0: i32) -> (i32, i32, i32) {
    %c0_i32 = arith.constant 0 : i32
    %c0_i32_0 = arith.constant 0 : i32
    %c0_i32_1 = arith.constant 0 : i32
    return %arg0, %c0_i32, %c0_i32_0 : i32, i32, i32
  }
}

</mosaic_0001>

<llo_original>
// kernel: tpu_custom_call.1
$region0: #{tpu_custom_call.1}
  #allocation0 [shape = 'u32[]', space=smem, size = 0x4, offset = 0x4, fixed_abs, tag = 'smem constant byte address 0x4 - core index']
  #allocation1 [shape = 'u32[144,128]{1,0:T(1,128)}', space=vmem, size = 0x12000, scoped, tag = 'internal scratch']
  %s0 = inlined_call_operand.vmem [shape: f32[2,18,128], index: 0, kind: input, shape index: {}]
  %s1 = inlined_call_operand.vmem [shape: f32[9,128], index: 1, kind: input, shape index: {}]
  %s2 = inlined_call_operand.hbm [shape: f32[128,128], index: 2, kind: input, shape index: {}]
  %s3 = inlined_call_operand.hbm [shape: f32[2,16,128], index: 3, kind: output, shape index: {}]
  %s4 = sld [smem:[#allocation0]]
  $region49: #{tpu_custom_call.1} parent=0
    _
  %s6 = ssub.s32 1, %s4
  %s7 = scalar_select 0, %s6, %s4
  $region1: #{tpu_custom_call.1} parent=0
    #allocation2 [shape = 'u8[65536]{0}', space=vmem, size = 0x10000, scoped, tag = 'input window, operand 2, single buffered']
    #allocation3 [shape = 's32[2]{0}', space=sflag, size = 0x8, scoped, tag = 'scoped memory for tpu_custom_call.1']
    #allocation4 [shape = 's32[2]{0}', space=sflag, size = 0x8, scoped, tag = 'scoped memory for tpu_custom_call.1']
    #allocation5 [shape = 'u8[16384]{0}', space=vmem, size = 0x4000, scoped, tag = 'output window, operand 0']
    %8 = vsyncpa [#allocation3], 0
    %9 = vsyncpa [#allocation4], 0
    %s10 = scalar_lea.sflag [#allocation4], 1
    %11 = vsyncpa %s10, 0
    loop: start=0, step=1, limit=4
    $region2: #{tpu_custom_call.1} parent=1 // loop_pre_header
      _
    $region3: #{tpu_custom_call.1} parent=1 // loop_header
      %s13 = sphi 0, %s17
      %p14 = scmp.ge.s32.totalorder %s13, 4
      %s23 = sphi 0, %s25
      %s26 = sphi 0, %s23
      %s27 = sphi 0, %s26
      %s43 = sphi 0, %s27
      %s47 = sphi 0, %s47
      %s49 = sphi 0, %s47
      %s50 = sphi 0, %s49
      %s64 = sphi 0, %s50
      %s68 = sphi 0, %s68
      %s70 = sphi 0, %s68
      %s71 = sphi 0, %s70
      %s85 = sphi 0, %s71
      %s91 = sphi 0, %s93
      %s94 = sphi 0, %s91
      %s95 = sphi 0, %s94
      %s111 = sphi 0, %s95
    $region4: #{tpu_custom_call.1} parent=1 // loop_header_branch
      %16 = sbr.rel (%p14) target = $region8
    $region5: #{tpu_custom_call.1} parent=1 // loop_body
      %s18 = ssub.s32 %s13, 1
      %s19 = ssub.s32 %s13, 2
      %s20 = sadd.s32 %s13, 1
      %s21 = ssub.s32 %s13, %s20
      %p22 = scmp.eq.s32.totalorder %s21, 0
      %s24 = sadd.s32 %s23, 1
      %s25 = scalar_select %p22, %s23, %s24
      %p28 = pneg %p22
      %p29 = scmp.eq.s32.totalorder %s13, 1
      %p30 = por %p28, %p29
      %p31 = scmp.ne.s32.totalorder %s23, %s26
      %p32 = scmp.eq.s32.totalorder %s13, 0
      %p33 = por %p31, %p32
      %p34 = scmp.ne.s32.totalorder %s23, %s26
      %p35 = scmp.eq.s32.totalorder %s18, 1
      %p36 = por %p34, %p35
      %p37 = scmp.ne.s32.totalorder %s26, %s27
      %p38 = scmp.eq.s32.totalorder %s18, 0
      %p39 = por %p37, %p38
      %p40 = scmp.ne.s32.totalorder %s26, %s27
      %p41 = scmp.eq.s32.totalorder %s19, 1
      %p42 = por %p40, %p41
      %p44 = scmp.ne.s32.totalorder %s27, %s43
      %p45 = scmp.eq.s32.totalorder %s19, 0
      %p46 = por %p44, %p45
      %s48 = sadd.s32 %s47, 1
      %p51 = scmp.eq.s32.totalorder %s13, 1
      %p52 = scmp.ne.s32.totalorder %s47, %s49
      %p53 = scmp.eq.s32.totalorder %s13, 0
      %p54 = por %p52, %p53
      %p55 = scmp.ne.s32.totalorder %s47, %s49
      %p56 = scmp.eq.s32.totalorder %s18, 1
      %p57 = por %p55, %p56
      %p58 = scmp.ne.s32.totalorder %s49, %s50
      %p59 = scmp.eq.s32.totalorder %s18, 0
      %p60 = por %p58, %p59
      %p61 = scmp.ne.s32.totalorder %s49, %s50
      %p62 = scmp.eq.s32.totalorder %s19, 1
      %p63 = por %p61, %p62
      %p65 = scmp.ne.s32.totalorder %s50, %s64
      %p66 = scmp.eq.s32.totalorder %s19, 0
      %p67 = por %p65, %p66
      %s69 = sadd.s32 %s68, 1
      %p72 = scmp.eq.s32.totalorder %s13, 1
      %p73 = scmp.ne.s32.totalorder %s68, %s70
      %p74 = scmp.eq.s32.totalorder %s13, 0
      %p75 = por %p73, %p74
      %p76 = scmp.ne.s32.totalorder %s68, %s70
      %p77 = scmp.eq.s32.totalorder %s18, 1
      %p78 = por %p76, %p77
      %p79 = scmp.ne.s32.totalorder %s70, %s71
      %p80 = scmp.eq.s32.totalorder %s18, 0
      %p81 = por %p79, %p80
      %p82 = scmp.ne.s32.totalorder %s70, %s71
      %p83 = scmp.eq.s32.totalorder %s19, 1
      %p84 = por %p82, %p83
      %p86 = scmp.ne.s32.totalorder %s71, %s85
      %p87 = scmp.eq.s32.totalorder %s19, 0
      %p88 = por %p86, %p87
      %s89 = ssub.s32 %s13, %s20
      %p90 = scmp.eq.s32.totalorder %s89, 0
      %s92 = sadd.s32 %s91, 1
      %s93 = scalar_select %p90, %s91, %s92
      %p96 = pneg %p90
      %p97 = scmp.eq.s32.totalorder %s13, 1
      %p98 = por %p96, %p97
      %p99 = scmp.ne.s32.totalorder %s91, %s94
      %p100 = scmp.eq.s32.totalorder %s13, 0
      %p101 = por %p99, %p100
      %p102 = scmp.ne.s32.totalorder %s91, %s94
      %p103 = scmp.eq.s32.totalorder %s18, 1
      %p104 = por %p102, %p103
      %p105 = scmp.ne.s32.totalorder %s94, %s95
      %p106 = scmp.eq.s32.totalorder %s18, 0
      %p107 = por %p105, %p106
      %p108 = scmp.ne.s32.totalorder %s94, %s95
      %p109 = scmp.eq.s32.totalorder %s19, 1
      %p110 = por %p108, %p109
      %p112 = scmp.ne.s32.totalorder %s95, %s111
      %p113 = scmp.eq.s32.totalorder %s19, 0
      %p114 = por %p112, %p113
      %p115 = scmp.le.s32.totalorder 1, %s13
      %p116 = scmp.lt.s32.totalorder %s13, 3
      %p117 = pnand %p115, %p116
      %p118 = pneg %p117
      // Predicated region
      $region9: #{tpu_custom_call.1} parent=5 // pred_check
        _
      $region10: #{tpu_custom_call.1} parent=5 // pred_check_branch
        %120 = sbr.rel (%p117) target = $region12
      $region11: #{tpu_custom_call.1} parent=5 // pred_region
        %s121 = ssub.s32 %s13, 1
        // Predicated region
        $region13: #{tpu_custom_call.1} parent=11 // pred_check
          %p122 = pneg %p60
        $region14: #{tpu_custom_call.1} parent=11 // pred_check_branch
          %124 = sbr.rel (%p122) target = $region16
        $region15: #{tpu_custom_call.1} parent=11 // pred_region
          _
        $region16: #{tpu_custom_call.1} parent=11 // pred_fallthru
          _
        // Predicated region
        $region17: #{tpu_custom_call.1} parent=11 // pred_check
          %p125 = pneg %p81
        $region18: #{tpu_custom_call.1} parent=11 // pred_check_branch
          %127 = sbr.rel (%p125) target = $region20
        $region19: #{tpu_custom_call.1} parent=11 // pred_region
          %s129 = ssub.s32 2048, 2048
          %130 = vsyncadd [#allocation3], %s129
          %s131 = sshll.u32 [#allocation2], 4
          %s132 = int_to_ptr.vmem [resolvable:$true] %s131
          %137 = dma.hbm_to_vmem [thread:$0]  %s2, 2048, %s132, [#allocation3], 128, 128, 8
        $region20: #{tpu_custom_call.1} parent=11 // pred_fallthru
          _
      $region12: #{tpu_custom_call.1} parent=5 // pred_fallthru
        _
      %p138 = scmp.lt.s32.totalorder %s13, 2
      // Predicated region
      $region21: #{tpu_custom_call.1} parent=5 // pred_check
        %p139 = pneg %p138
      $region22: #{tpu_custom_call.1} parent=5 // pred_check_branch
        %141 = sbr.rel (%p139) target = $region24
      $region23: #{tpu_custom_call.1} parent=5 // pred_region
        // Predicated region
        $region25: #{tpu_custom_call.1} parent=23 // pred_check
          %p142 = pneg %p33
        $region26: #{tpu_custom_call.1} parent=23 // pred_check_branch
          %144 = sbr.rel (%p142) target = $region28
        $region27: #{tpu_custom_call.1} parent=23 // pred_region
          %p145 = scmp.lt.s32.totalorder %s13, 1
          %s146 = scalar_select %p145, %s13, 1
          %s147 = smul.addr %s146, 3
          %s148 = smul.addr %s147, 8
          %s149 = scalar_lea.vmem %s0, %s148
        $region28: #{tpu_custom_call.1} parent=23 // pred_fallthru
          _
      $region24: #{tpu_custom_call.1} parent=5 // pred_fallthru
        _
      %p150 = scmp.le.s32.totalorder 1, %s13
      %p151 = scmp.lt.s32.totalorder %s13, 3
      %p152 = pnand %p150, %p151
      %p153 = pneg %p152
      // Predicated region
      $region29: #{tpu_custom_call.1} parent=5 // pred_check
        _
      $region30: #{tpu_custom_call.1} parent=5 // pred_check_branch
        %155 = sbr.rel (%p152) target = $region32
      $region31: #{tpu_custom_call.1} parent=5 // pred_region
        %s156 = ssub.s32 %s13, 1
        // Predicated region
        $region33: #{tpu_custom_call.1} parent=31 // pred_check
          %p157 = pneg %p81
        $region34: #{tpu_custom_call.1} parent=31 // pred_check_branch
          %159 = sbr.rel (%p157) target = $region36
        $region35: #{tpu_custom_call.1} parent=31 // pred_region
          %160 = dma.done [#allocation3], 2048
        $region36: #{tpu_custom_call.1} parent=31 // pred_fallthru
          _
        %p161 = scmp.lt.s32.totalorder %s18, 1
        %s162 = scalar_select %p161, %s18, 1
        %s163 = smul.addr %s162, 3
        %s164 = smul.addr %s163, 8
        %s165 = scalar_lea.vmem %s0, %s164
        %p166 = pneg %p39
        %p167 = pneg %p36
        %p168 = pneg %p60
        %p169 = pneg %p57
        %p170 = pneg %p81
        %p171 = pneg %p78
        %p172 = pneg %p107
        %p173 = pneg %p104
        %s174 = sand.u32 %s94, 1
        %s175 = scalar_lea.sflag [#allocation4], %s174
        %s176 = sand.u32 %s94, 1
        %s177 = smul.addr %s176, 16
        %s178 = scalar_lea.vmem [#allocation5], %s177
        %p179 = scmp.lt.s32.totalorder %s18, 1
        %s180 = scalar_select %p179, %s18, 1
        %s181 = smul.addr %s180, 3
        %s182 = smul.addr %s181, 8
        %s183 = scalar_lea.vmem %s0, %s182
        %v184 = vld [vmem:[%s183] sm:$0xff]
        %v185 = vld [vmem:[%s183 + $0x8] sm:$0xff]
        %v186 = vld [vmem:[%s1] sm:$0x1]
        %v187 = vlaneseq
        %v188 = vshrl.u32 %v187, 7
        %v189 = vsub.s32 0, %v188
        %v190 = vrot.slane %v186, %v189
        %v191 = vmul.f32 %v184, %v190
        %v192 = vmul.f32 %v185, %v190
        %v193 = vadd.f32 %v191, 0.0
        %v194 = vadd.f32 %v192, 0.0
        %195 = vrot.lane.b32.xlu0 %v184, 124
        %v196 = vpop.permute.xlu0 %195
        %197 = vrot.lane.b32.xlu0 %v185, 124
        %v198 = vpop.permute.xlu0 %197
        %v199 = vld [vmem:[%s1 + $0x1] sm:$0x1]
        %v200 = vlaneseq
        %v201 = vshrl.u32 %v200, 7
        %v202 = vsub.s32 0, %v201
        %v203 = vrot.slane %v199, %v202
        %v204 = vmul.f32 %v196, %v203
        %v205 = vmul.f32 %v198, %v203
        %v206 = vadd.f32 %v193, %v204
        %v207 = vadd.f32 %v194, %v205
        %208 = vrot.lane.b32.xlu0 %v184, 120
        %v209 = vpop.permute.xlu0 %208
        %210 = vrot.lane.b32.xlu0 %v185, 120
        %v211 = vpop.permute.xlu0 %210
        %v212 = vld [vmem:[%s1 + $0x2] sm:$0x1]
        %v213 = vlaneseq
        %v214 = vshrl.u32 %v213, 7
        %v215 = vsub.s32 0, %v214
        %v216 = vrot.slane %v212, %v215
        %v217 = vmul.f32 %v209, %v216
        %v218 = vmul.f32 %v211, %v216
        %v219 = vadd.f32 %v206, %v217
        %v220 = vadd.f32 %v207, %v218
        %v221 = vld [vmem:[%s183 + $0x1] sm:$0xff]
        %v222 = vld [vmem:[%s183 + $0x9] sm:$0xff]
        %v223 = vld [vmem:[%s1 + $0x3] sm:$0x1]
        %v224 = vlaneseq
        %v225 = vshrl.u32 %v224, 7
        %v226 = vsub.s32 0, %v225
        %v227 = vrot.slane %v223, %v226
        %v228 = vmul.f32 %v221, %v227
        %v229 = vmul.f32 %v222, %v227
        %v230 = vadd.f32 %v219, %v228
        %v231 = vadd.f32 %v220, %v229
        %232 = vrot.lane.b32.xlu0 %v221, 124
        %v233 = vpop.permute.xlu0 %232
        %234 = vrot.lane.b32.xlu0 %v222, 124
        %v235 = vpop.permute.xlu0 %234
        %v236 = vld [vmem:[%s1 + $0x4] sm:$0x1]
        %v237 = vlaneseq
        %v238 = vshrl.u32 %v237, 7
        %v239 = vsub.s32 0, %v238
        %v240 = vrot.slane %v236, %v239
        %v241 = vmul.f32 %v233, %v240
        %v242 = vmul.f32 %v235, %v240
        %v243 = vadd.f32 %v230, %v241
        %v244 = vadd.f32 %v231, %v242
        %245 = vrot.lane.b32.xlu0 %v221, 120
        %v246 = vpop.permute.xlu0 %245
        %247 = vrot.lane.b32.xlu0 %v222, 120
        %v248 = vpop.permute.xlu0 %247
        %v249 = vld [vmem:[%s1 + $0x5] sm:$0x1]
        %v250 = vlaneseq
        %v251 = vshrl.u32 %v250, 7
        %v252 = vsub.s32 0, %v251
        %v253 = vrot.slane %v249, %v252
        %v254 = vmul.f32 %v246, %v253
        %v255 = vmul.f32 %v248, %v253
        %v256 = vadd.f32 %v243, %v254
        %v257 = vadd.f32 %v244, %v255
        %v258 = vld [vmem:[%s183 + $0x2] sm:$0xff]
        %v259 = vld [vmem:[%s183 + $0xa] sm:$0xff]
        %v260 = vld [vmem:[%s1 + $0x6] sm:$0x1]
        %v261 = vlaneseq
        %v262 = vshrl.u32 %v261, 7
        %v263 = vsub.s32 0, %v262
        %v264 = vrot.slane %v260, %v263
        %v265 = vmul.f32 %v258, %v264
        %v266 = vmul.f32 %v259, %v264
        %v267 = vadd.f32 %v256, %v265
        %v268 = vadd.f32 %v257, %v266
        %269 = vrot.lane.b32.xlu0 %v258, 124
        %v270 = vpop.permute.xlu0 %269
        %271 = vrot.lane.b32.xlu0 %v259, 124
        %v272 = vpop.permute.xlu0 %271
        %v273 = vld [vmem:[%s1 + $0x7] sm:$0x1]
        %v274 = vlaneseq
        %v275 = vshrl.u32 %v274, 7
        %v276 = vsub.s32 0, %v275
        %v277 = vrot.slane %v273, %v276
        %v278 = vmul.f32 %v270, %v277
        %v279 = vmul.f32 %v272, %v277
        %v280 = vadd.f32 %v267, %v278
        %v281 = vadd.f32 %v268, %v279
        %282 = vrot.lane.b32.xlu0 %v258, 120
        %v283 = vpop.permute.xlu0 %282
        %284 = vrot.lane.b32.xlu0 %v259, 120
        %v285 = vpop.permute.xlu0 %284
        %v286 = vld [vmem:[%s1 + $0x8] sm:$0x1]
        %v287 = vlaneseq
        %v288 = vshrl.u32 %v287, 7
        %v289 = vsub.s32 0, %v288
        %v290 = vrot.slane %v286, %v289
        %v291 = vmul.f32 %v283, %v290
        %v292 = vmul.f32 %v285, %v290
        %v293 = vadd.f32 %v280, %v291
        %v294 = vadd.f32 %v281, %v292
        %v295 = vld [vmem:[#allocation2] sm:$0xff]
        %v296 = vld [vmem:[#allocation2 + $0x8] sm:$0xff]
        %v297 = vld [vmem:[#allocation2 + $0x10] sm:$0xff]
        %v298 = vld [vmem:[#allocation2 + $0x18] sm:$0xff]
        %v299 = vld [vmem:[#allocation2 + $0x20] sm:$0xff]
        %v300 = vld [vmem:[#allocation2 + $0x28] sm:$0xff]
        %v301 = vld [vmem:[#allocation2 + $0x30] sm:$0xff]
        %v302 = vld [vmem:[#allocation2 + $0x38] sm:$0xff]
        %v303 = vld [vmem:[#allocation2 + $0x40] sm:$0xff]
        %v304 = vld [vmem:[#allocation2 + $0x48] sm:$0xff]
        %v305 = vld [vmem:[#allocation2 + $0x50] sm:$0xff]
        %v306 = vld [vmem:[#allocation2 + $0x58] sm:$0xff]
        %v307 = vld [vmem:[#allocation2 + $0x60] sm:$0xff]
        %v308 = vld [vmem:[#allocation2 + $0x68] sm:$0xff]
        %v309 = vld [vmem:[#allocation2 + $0x70] sm:$0xff]
        %v310 = vld [vmem:[#allocation2 + $0x78] sm:$0xff]
        %311 = vmatprep.subr.mxu0 0.0
        %312 = vmatpush1.msra.mxu0 %v295
        %313 = vmatprep.subr.mxu0 0.0
        %314 = vmatpush1.msra.mxu0 %v296
        %315 = vmatprep.subr.mxu0 0.0
        %316 = vmatpush1.msra.mxu0 %v297
        %317 = vmatprep.subr.mxu0 0.0
        %318 = vmatpush1.msra.mxu0 %v298
        %319 = vmatprep.subr.mxu0 0.0
        %320 = vmatpush1.msra.mxu0 %v299
        %321 = vmatprep.subr.mxu0 0.0
        %322 = vmatpush1.msra.mxu0 %v300
        %323 = vmatprep.subr.mxu0 0.0
        %324 = vmatpush1.msra.mxu0 %v301
        %325 = vmatprep.subr.mxu0 0.0
        %326 = vmatpush1.msra.mxu0 %v302
        %327 = vmatprep.subr.mxu0 0.0
        %328 = vmatpush1.msra.mxu0 %v303
        %329 = vmatprep.subr.mxu0 0.0
        %330 = vmatpush1.msra.mxu0 %v304
        %331 = vmatprep.subr.mxu0 0.0
        %332 = vmatpush1.msra.mxu0 %v305
        %333 = vmatprep.subr.mxu0 0.0
        %334 = vmatpush1.msra.mxu0 %v306
        %335 = vmatprep.subr.mxu0 0.0
        %336 = vmatpush1.msra.mxu0 %v307
        %337 = vmatprep.subr.mxu0 0.0
        %338 = vmatpush1.msra.mxu0 %v308
        %339 = vmatprep.subr.mxu0 0.0
        %340 = vmatpush1.msra.mxu0 %v309
        %341 = vmatprep.subr.mxu0 0.0
        %342 = vmatpush1.msra.mxu0 %v310
        %343 = vmatprep.subr.mxu0 0.0
        %344 = vmatpush1.msra.mxu0 0.0
        %345 = vmatprep.subr.mxu0 0.0
        %346 = vmatpush1.msra.mxu0 0.0
        %347 = vmatprep.subr.mxu0 0.0
        %348 = vmatpush1.msra.mxu0 0.0
        %349 = vmatprep.subr.mxu0 0.0
        %350 = vmatpush1.msra.mxu0 0.0
        %351 = vmatprep.subr.mxu0 0.0
        %352 = vmatpush1.msra.mxu0 0.0
        %353 = vmatprep.subr.mxu0 0.0
        %354 = vmatpush1.msra.mxu0 0.0
        %355 = vmatprep.subr.mxu0 0.0
        %356 = vmatpush1.msra.mxu0 0.0
        %357 = vmatprep.subr.mxu0 0.0
        %358 = vmatpush1.msra.mxu0 0.0
        %359 = vmatprep.subr.mxu0 0.0
        %360 = vmatpush1.msra.mxu0 0.0
        %361 = vmatprep.subr.mxu0 0.0
        %362 = vmatpush1.msra.mxu0 0.0
        %363 = vmatprep.subr.mxu0 0.0
        %364 = vmatpush1.msra.mxu0 0.0
        %365 = vmatprep.subr.mxu0 0.0
        %366 = vmatpush1.msra.mxu0 0.0
        %367 = vmatprep.subr.mxu0 0.0
        %368 = vmatpush1.msra.mxu0 0.0
        %369 = vmatprep.subr.mxu0 0.0
        %370 = vmatpush1.msra.mxu0 0.0
        %371 = vmatprep.subr.mxu0 0.0
        %372 = vmatpush1.msra.mxu0 0.0
        %373 = vmatprep.subr.mxu0 0.0
        %374 = vmatpush1.msra.mxu0 0.0
        %375 = vmatprep.mubr.f32.mxu0 0.0
        %376 = vmatmul.mubr.f32.gmra.mrb[0].mxu0 %v293
        %v377 = vpop.f32.mrb[0].mxu0
        %v378 = vadd.f32 0.0, %v377
        %v379 = vpop.f32.mrb[0].mxu0
        %380 = vmatprep.mubr.f32.mxu0 0.0
        %381 = vmatmul.mubr.f32.gmra.mrb[0].mxu0 %v294
        %v382 = vpop.f32.mrb[0].mxu0
        %v383 = vadd.f32 0.0, %v382
        %v384 = vpop.f32.mrb[0].mxu0
        %385 = vdwg.mxu0
        %386 = vst [vmem:[%s178] sm:$0xff] %v378
        %387 = vst [vmem:[%s178 + $0x8] sm:$0xff] %v383
        %s388 = sand.u32 %s94, 1
        %s389 = scalar_lea.sflag [#allocation4], %s388
        %s390 = sand.u32 %s94, 1
        %s391 = smul.addr %s390, 16
        %s392 = scalar_lea.vmem [#allocation5], %s391
        // Predicated region
        $region37: #{tpu_custom_call.1} parent=31 // pred_check
          %p393 = pneg %p104
        $region38: #{tpu_custom_call.1} parent=31 // pred_check_branch
          %395 = sbr.rel (%p393) target = $region40
        $region39: #{tpu_custom_call.1} parent=31 // pred_region
          %s397 = ssub.s32 256, 256
          %398 = vsyncadd %s389, %s397
          %s399 = smul.addr %s18, 2
          %s400 = smul.addr %s399, 128
          %s401 = scalar_lea.hbm %s3, %s400
          %s402 = sshll.u32 %s392, 4
          %s403 = int_to_ptr.vmem [resolvable:$true] %s402
          %408 = dma.vmem_to_hbm [thread:$0]  %s403, 256, %s401, %s389, 128, 128, 8
        $region40: #{tpu_custom_call.1} parent=31 // pred_fallthru
          _
      $region32: #{tpu_custom_call.1} parent=5 // pred_fallthru
        _
      %p409 = scmp.le.s32.totalorder 2, %s13
      // Predicated region
      $region41: #{tpu_custom_call.1} parent=5 // pred_check
        %p410 = pneg %p409
      $region42: #{tpu_custom_call.1} parent=5 // pred_check_branch
        %412 = sbr.rel (%p410) target = $region44
      $region43: #{tpu_custom_call.1} parent=5 // pred_region
        %s413 = ssub.s32 %s13, 2
        // Predicated region
        $region45: #{tpu_custom_call.1} parent=43 // pred_check
          %p414 = pneg %p110
        $region46: #{tpu_custom_call.1} parent=43 // pred_check_branch
          %416 = sbr.rel (%p414) target = $region48
        $region47: #{tpu_custom_call.1} parent=43 // pred_region
          %s417 = sand.u32 %s95, 1
          %s418 = scalar_lea.sflag [#allocation4], %s417
          %s419 = sand.u32 %s95, 1
          %s420 = smul.addr %s419, 16
          %s421 = scalar_lea.vmem [#allocation5], %s420
          %422 = dma.done %s418, 256
        $region48: #{tpu_custom_call.1} parent=43 // pred_fallthru
          _
      $region44: #{tpu_custom_call.1} parent=5 // pred_fallthru
        _
    $region6: #{tpu_custom_call.1} parent=1 // loop_footer
      %s17 = sadd.s32 1, %s13
    $region7: #{tpu_custom_call.1} parent=1 // loop_footer_branch
      %12 = sbr.rel target = $region3
    $region8: #{tpu_custom_call.1} parent=1 // loop_exit
      _
    %423 = vsyncpa [#allocation3], 1
    %s424 = scalar_lea.sflag [#allocation3], 1
    %425 = vsyncpa %s424, 1
    %426 = vsyncpa [#allocation4], 1
    %s427 = scalar_lea.sflag [#allocation4], 1
    %428 = vsyncpa %s427, 1

</llo_original>
